<compile_context>
chip_gen: v6e
topology: v6e:2x2x1
jax: 0.10.0
libtpu: 0.0.40
codegen_flags: <defaults>
</compile_context>

<pallas_src>
import functools

import jax
import jax.numpy as jnp
import numpy as np
from jax import lax
from jax.experimental import pallas as pl
from jax.experimental.pallas import tpu as pltpu


def _round_up(v, m):
    return (v + m - 1) // m * m


def cnn_maxpool_kernel(x_ref, w_ref, b_ref, o_ref, *, window, t_valid, t_pad):
    """Fused W-tap conv + max-over-time, single grid point.

    x_ref : (Bp, Lp, D)  f32  VMEM   zero-padded activations, Lp >= t_pad + window - 1
    w_ref : (W, D, Cp)   bf16 VMEM   per-tap conv weight, C lane-padded to Cp (=128)
    b_ref : (1, Cp)      f32  VMEM   lane-padded bias
    o_ref : (Bp, Cp)     f32  VMEM   lane/sublane-dense output (unmasked store)
    """
    bp, cp = o_ref.shape
    d = x_ref.shape[-1]

    # W static-slice 2-D MXU dots, accumulated in f32 (bf16 operands = MXU fast path).
    acc = jnp.zeros((bp * t_pad, cp), jnp.float32)
    for w in range(window):                                   # static, W is tiny (3)
        xw = x_ref[:, pl.ds(w, t_pad), :]                     # (Bp, Tp, D) 32-bit slice
        xw = xw.reshape(bp * t_pad, d)                        # tile-aligned merge (Tp % 8 == 0)
        acc = acc + jnp.dot(xw.astype(jnp.bfloat16), w_ref[w],
                            preferred_element_type=jnp.float32)

    acc = acc.reshape(bp, t_pad, cp)                          # tile-aligned split (Tp % 8 == 0)
    # Padded time rows saw zero-padded input rows -> mask them out before the max.
    t_idx = lax.broadcasted_iota(jnp.int32, (bp, t_pad, cp), 1)
    acc = jnp.where(t_idx < t_valid, acc, -jnp.inf)
    # Bias is constant over time -> add after the max; epilogue stays f32.
    res = jnp.max(acc, axis=1) + b_ref[...]                   # (Bp, Cp)
    o_ref[...] = res.astype(o_ref.dtype)


def init_cnn_maxpool(weight, bias):
    """One-time parameter packing (hoisted off the per-call hot path).

    weight: (W, D, C)   (PyTorch Conv2d weight (C, 1, W, D) transposed)
    bias:   (1, C)
    """
    W, D, C = weight.shape
    Cp = _round_up(C, 128)                                    # lane-dense output channels
    w_prep = (jnp.zeros((W, D, Cp), jnp.bfloat16)
              .at[:, :, :C].set(weight.astype(jnp.bfloat16)))
    b_prep = jnp.zeros((1, Cp), jnp.float32).at[:, :C].set(bias.astype(jnp.float32))
    return w_prep, b_prep


@functools.partial(jax.jit, static_argnames=("window", "out_channels"))
def cnn_maxpool(x, w_prep, b_prep, *, window, out_channels):
    """Forward pass. Per-call XLA graph: pad fusion -> Pallas call -> slice."""
    B, L, D = x.shape
    W = window
    T = L - W + 1
    Cp = w_prep.shape[-1]
    Bp = _round_up(B, 8)          # sublane-dense output -> unmasked vst
    Tp = _round_up(T, 8)          # tile-aligned in-kernel reshapes
    Lp = Tp + W - 1               # every tap slice of length Tp stays in-bounds

    # Single fused producer: zero pad batch + time (no gather / im2col in the wrapper).
    xp = jnp.pad(x, ((0, Bp - B), (0, Lp - L), (0, 0)))

    kernel = functools.partial(cnn_maxpool_kernel, window=W, t_valid=T, t_pad=Tp)
    flops = 2 * Bp * Tp * W * D * Cp
    bytes_accessed = xp.size * 4 + w_prep.size * 2 + b_prep.size * 4 + Bp * Cp * 4

    out_pad = pl.pallas_call(
        kernel,
        out_shape=jax.ShapeDtypeStruct((Bp, Cp), jnp.float32),
        in_specs=[
            pl.BlockSpec(memory_space=pltpu.MemorySpace.VMEM),
            pl.BlockSpec(memory_space=pltpu.MemorySpace.VMEM),
            pl.BlockSpec(memory_space=pltpu.MemorySpace.VMEM),
        ],
        out_specs=pl.BlockSpec(memory_space=pltpu.MemorySpace.VMEM),
        cost_estimate=pl.CostEstimate(
            flops=flops, transcendentals=0, bytes_accessed=bytes_accessed),
    )(xp, w_prep, b_prep)
    return out_pad[:B, :out_channels]


def reference(x, weight, bias):
    """Pure-JAX f32 reference identical to the PyTorch forward."""
    W, D, C = weight.shape
    T = x.shape[1] - W + 1
    wins = jnp.stack([x[:, w:w + T, :] for w in range(W)], axis=2)   # (B, T, W, D)
    scores = jnp.einsum("btwd,wdc->btc", wins, weight) + bias        # (B, T, C)
    return jnp.max(scores, axis=1)                                   # (B, C)


if __name__ == "__main__":
    # Shapes from the module's driver script.
    batch, seq_len, word_dim = 10, 20, 50
    window_size, out_channels = 3, 100

    key = jax.random.PRNGKey(0)
    kx, kw, kb = jax.random.split(key, 3)

    x = jax.random.normal(kx, (batch, seq_len, word_dim), dtype=jnp.float32)

    # Deterministic init mimicking nn.Conv2d defaults:
    # uniform(-1/sqrt(fan_in), 1/sqrt(fan_in)) with fan_in = 1 * W * D.
    fan_in = window_size * word_dim
    bound = 1.0 / np.sqrt(fan_in)
    weight = jax.random.uniform(
        kw, (window_size, word_dim, out_channels),
        minval=-bound, maxval=bound, dtype=jnp.float32)
    bias = jax.random.uniform(
        kb, (1, out_channels), minval=-bound, maxval=bound, dtype=jnp.float32)

    # One-time parameter packing (not on the per-call path).
    w_prep, b_prep = init_cnn_maxpool(weight, bias)

    out = jax.block_until_ready(
        cnn_maxpool(x, w_prep, b_prep, window=window_size, out_channels=out_channels))
    ref = jax.block_until_ready(reference(x, weight, bias))

    # bf16 MXU operands (f32 accumulation) vs. f32 reference -> relaxed tolerance.
    np.testing.assert_allclose(np.asarray(out), np.asarray(ref), rtol=3e-2, atol=3e-2)

    print("KERNEL_OK")
</pallas_src>

<mosaic_0001>
module attributes {stable_mosaic.version = 11 : i64} {
  func.func @cnn_maxpool_kernel(%arg0: memref<16x26x50xf32, #tpu.memory_space<vmem>>, %arg1: memref<3x50x128xbf16, #tpu.memory_space<vmem>>, %arg2: memref<1x128xf32, #tpu.memory_space<vmem>>, %arg3: memref<16x128xf32, #tpu.memory_space<vmem>>) attributes {dimension_semantics = [], scalar_prefetch = 0 : i64, scratch_operands = 0 : i64, tpu.core_type = #tpu.core_type<tc>} {
    %cst = arith.constant 0.000000e+00 : f32
    %0 = vector.broadcast %cst : f32 to vector<384x128xf32>
    %c0 = arith.constant 0 : index
    %c0_0 = arith.constant 0 : index
    %c0_1 = arith.constant 0 : index
    %1 = vector.load %arg0[%c0, %c0_0, %c0_1] : memref<16x26x50xf32, #tpu.memory_space<vmem>>, vector<16x24x50xf32>
    %2 = vector.shape_cast %1 : vector<16x24x50xf32> to vector<384x50xf32>
    %3 = arith.truncf %2 : vector<384x50xf32> to vector<384x50xbf16>
    %c0_2 = arith.constant 0 : index
    %c0_3 = arith.constant 0 : index
    %c0_4 = arith.constant 0 : index
    %4 = vector.load %arg1[%c0_2, %c0_3, %c0_4] : memref<3x50x128xbf16, #tpu.memory_space<vmem>>, vector<1x50x128xbf16>
    %5 = vector.shape_cast %4 : vector<1x50x128xbf16> to vector<50x128xbf16>
    %cst_5 = arith.constant dense<0.000000e+00> : vector<384x128xf32>
    %6 = tpu.matmul %3, %5, %cst_5 {dimension_numbers = #tpu.dot_dimension_numbers<[1], [0], [0], [1], [0, 0, 1, 1], [], []>} : vector<384x50xbf16>, vector<50x128xbf16>, vector<384x128xf32> -> vector<384x128xf32>
    %7 = arith.addf %0, %6 : vector<384x128xf32>
    %c0_6 = arith.constant 0 : index
    %c1 = arith.constant 1 : index
    %c0_7 = arith.constant 0 : index
    %8 = vector.load %arg0[%c0_6, %c1, %c0_7] : memref<16x26x50xf32, #tpu.memory_space<vmem>>, vector<16x24x50xf32>
    %9 = vector.shape_cast %8 : vector<16x24x50xf32> to vector<384x50xf32>
    %10 = arith.truncf %9 : vector<384x50xf32> to vector<384x50xbf16>
    %c1_8 = arith.constant 1 : index
    %c0_9 = arith.constant 0 : index
    %c0_10 = arith.constant 0 : index
    %11 = vector.load %arg1[%c1_8, %c0_9, %c0_10] : memref<3x50x128xbf16, #tpu.memory_space<vmem>>, vector<1x50x128xbf16>
    %12 = vector.shape_cast %11 : vector<1x50x128xbf16> to vector<50x128xbf16>
    %cst_11 = arith.constant dense<0.000000e+00> : vector<384x128xf32>
    %13 = tpu.matmul %10, %12, %cst_11 {dimension_numbers = #tpu.dot_dimension_numbers<[1], [0], [0], [1], [0, 0, 1, 1], [], []>} : vector<384x50xbf16>, vector<50x128xbf16>, vector<384x128xf32> -> vector<384x128xf32>
    %14 = arith.addf %7, %13 : vector<384x128xf32>
    %c0_12 = arith.constant 0 : index
    %c2 = arith.constant 2 : index
    %c0_13 = arith.constant 0 : index
    %15 = vector.load %arg0[%c0_12, %c2, %c0_13] : memref<16x26x50xf32, #tpu.memory_space<vmem>>, vector<16x24x50xf32>
    %16 = vector.shape_cast %15 : vector<16x24x50xf32> to vector<384x50xf32>
    %17 = arith.truncf %16 : vector<384x50xf32> to vector<384x50xbf16>
    %c2_14 = arith.constant 2 : index
    %c0_15 = arith.constant 0 : index
    %c0_16 = arith.constant 0 : index
    %18 = vector.load %arg1[%c2_14, %c0_15, %c0_16] : memref<3x50x128xbf16, #tpu.memory_space<vmem>>, vector<1x50x128xbf16>
    %19 = vector.shape_cast %18 : vector<1x50x128xbf16> to vector<50x128xbf16>
    %cst_17 = arith.constant dense<0.000000e+00> : vector<384x128xf32>
    %20 = tpu.matmul %17, %19, %cst_17 {dimension_numbers = #tpu.dot_dimension_numbers<[1], [0], [0], [1], [0, 0, 1, 1], [], []>} : vector<384x50xbf16>, vector<50x128xbf16>, vector<384x128xf32> -> vector<384x128xf32>
    %21 = arith.addf %14, %20 : vector<384x128xf32>
    %22 = vector.shape_cast %21 : vector<384x128xf32> to vector<16x24x128xf32>
    %23 = tpu.iota {dimensions = array<i32: 1>} : vector<16x24x128xi32>
    %c18_i32 = arith.constant 18 : i32
    %24 = vector.broadcast %c18_i32 : i32 to vector<16x24x128xi32>
    %25 = arith.cmpi slt, %23, %24 : vector<16x24x128xi32>
    %cst_18 = arith.constant 0xFF800000 : f32
    %26 = vector.broadcast %cst_18 : f32 to vector<16x24x128xf32>
    %27 = arith.select %25, %22, %26 : vector<16x24x128xi1>, vector<16x24x128xf32>
    %cst_19 = arith.constant dense<0xFF800000> : vector<16x128xf32>
    %28 = vector.multi_reduction <maximumf>, %27, %cst_19 [1] : vector<16x24x128xf32> to vector<16x128xf32>
    %c0_20 = arith.constant 0 : index
    %c0_21 = arith.constant 0 : index
    %29 = vector.load %arg2[%c0_20, %c0_21] : memref<1x128xf32, #tpu.memory_space<vmem>>, vector<1x128xf32>
    %30 = vector.broadcast %29 : vector<1x128xf32> to vector<16x128xf32>
    %31 = arith.addf %28, %30 : vector<16x128xf32>
    %c0_22 = arith.constant 0 : index
    %c0_23 = arith.constant 0 : index
    %32 = vector.load %arg3[%c0_22, %c0_23] : memref<16x128xf32, #tpu.memory_space<vmem>>, vector<16x128xf32>
    tpu.vector_store %arg3[%c0_22, %c0_23], %31 {strides = array<i32>} : memref<16x128xf32, #tpu.memory_space<vmem>>, vector<16x128xf32>,
    return
  }
}

</mosaic_0001>

<llo_original>
// kernel: cnn_maxpool.1
$region0: #{cnn_maxpool.1}
  #allocation0 [shape = 'u32[]', space=smem, size = 0x4, offset = 0x4, fixed_abs, tag = 'smem constant byte address 0x4 - core index']
  #allocation1 [shape = 'u32[144,128]{1,0:T(1,128)}', space=vmem, size = 0x12000, scoped, tag = 'internal scratch']
  %s0 = inlined_call_operand.vmem [shape: f32[16,26,50], index: 0, kind: input, shape index: {}]
  %s1 = inlined_call_operand.vmem [shape: bf16[3,50,128], index: 1, kind: input, shape index: {}]
  %s2 = inlined_call_operand.vmem [shape: f32[1,128], index: 2, kind: input, shape index: {}]
  %s3 = inlined_call_operand.hbm [shape: f32[16,128], index: 3, kind: output, shape index: {}]
  %s4 = sld [smem:[#allocation0]]
  $region22: #{cnn_maxpool.1} parent=0
    _
  %s6 = ssub.s32 1, %s4
  %s7 = scalar_select 0, %s6, %s4
  $region1: #{cnn_maxpool.1} parent=0
    #allocation2 [shape = 'u8[8192]{0}', space=vmem, size = 0x2000, scoped, tag = 'output window, operand 0, single buffered']
    #allocation3 [shape = 's32[1]{0}', space=sflag, size = 0x4, scoped, tag = 'scoped memory for cnn_maxpool.1']
    %8 = vsyncpa [#allocation3], 0
    // Predicated region
    $region2: #{cnn_maxpool.1} parent=1 // pred_check
      _
    $region3: #{cnn_maxpool.1} parent=1 // pred_check_branch
      %10 = sbr.rel (0) target = $region5
    $region4: #{cnn_maxpool.1} parent=1 // pred_region
      _
    $region5: #{cnn_maxpool.1} parent=1 // pred_fallthru
      _
    // Predicated region
    $region6: #{cnn_maxpool.1} parent=1 // pred_check
      _
    $region7: #{cnn_maxpool.1} parent=1 // pred_check_branch
      %12 = sbr.rel (0) target = $region9
    $region8: #{cnn_maxpool.1} parent=1 // pred_region
      _
    $region9: #{cnn_maxpool.1} parent=1 // pred_fallthru
      _
    // Predicated region
    $region10: #{cnn_maxpool.1} parent=1 // pred_check
      _
    $region11: #{cnn_maxpool.1} parent=1 // pred_check_branch
      %14 = sbr.rel (0) target = $region13
    $region12: #{cnn_maxpool.1} parent=1 // pred_region
      _
    $region13: #{cnn_maxpool.1} parent=1 // pred_fallthru
      _
    %v16 = vld [vmem:[%s0] sm:$0xff]
    %v17 = vld [vmem:[%s0 + $0x8] sm:$0xff]
    %v18 = vld [vmem:[%s0 + $0x10] sm:$0xff]
    %v19 = vld [vmem:[%s0 + $0x20] sm:$0xff]
    %v20 = vld [vmem:[%s0 + $0x28] sm:$0xff]
    %v21 = vld [vmem:[%s0 + $0x30] sm:$0xff]
    %v22 = vld [vmem:[%s0 + $0x40] sm:$0xff]
    %v23 = vld [vmem:[%s0 + $0x48] sm:$0xff]
    %v24 = vld [vmem:[%s0 + $0x50] sm:$0xff]
    %v25 = vld [vmem:[%s0 + $0x60] sm:$0xff]
    %v26 = vld [vmem:[%s0 + $0x68] sm:$0xff]
    %v27 = vld [vmem:[%s0 + $0x70] sm:$0xff]
    %v28 = vld [vmem:[%s0 + $0x80] sm:$0xff]
    %v29 = vld [vmem:[%s0 + $0x88] sm:$0xff]
    %v30 = vld [vmem:[%s0 + $0x90] sm:$0xff]
    %v31 = vld [vmem:[%s0 + $0xa0] sm:$0xff]
    %v32 = vld [vmem:[%s0 + $0xa8] sm:$0xff]
    %v33 = vld [vmem:[%s0 + $0xb0] sm:$0xff]
    %v34 = vld [vmem:[%s0 + $0xc0] sm:$0xff]
    %v35 = vld [vmem:[%s0 + $0xc8] sm:$0xff]
    %v36 = vld [vmem:[%s0 + $0xd0] sm:$0xff]
    %v37 = vld [vmem:[%s0 + $0xe0] sm:$0xff]
    %v38 = vld [vmem:[%s0 + $0xe8] sm:$0xff]
    %v39 = vld [vmem:[%s0 + $0xf0] sm:$0xff]
    %v40 = vld [vmem:[%s0 + $0x100] sm:$0xff]
    %v41 = vld [vmem:[%s0 + $0x108] sm:$0xff]
    %v42 = vld [vmem:[%s0 + $0x110] sm:$0xff]
    %v43 = vld [vmem:[%s0 + $0x120] sm:$0xff]
    %v44 = vld [vmem:[%s0 + $0x128] sm:$0xff]
    %v45 = vld [vmem:[%s0 + $0x130] sm:$0xff]
    %v46 = vld [vmem:[%s0 + $0x140] sm:$0xff]
    %v47 = vld [vmem:[%s0 + $0x148] sm:$0xff]
    %v48 = vld [vmem:[%s0 + $0x150] sm:$0xff]
    %v49 = vld [vmem:[%s0 + $0x160] sm:$0xff]
    %v50 = vld [vmem:[%s0 + $0x168] sm:$0xff]
    %v51 = vld [vmem:[%s0 + $0x170] sm:$0xff]
    %v52 = vld [vmem:[%s0 + $0x180] sm:$0xff]
    %v53 = vld [vmem:[%s0 + $0x188] sm:$0xff]
    %v54 = vld [vmem:[%s0 + $0x190] sm:$0xff]
    %v55 = vld [vmem:[%s0 + $0x1a0] sm:$0xff]
    %v56 = vld [vmem:[%s0 + $0x1a8] sm:$0xff]
    %v57 = vld [vmem:[%s0 + $0x1b0] sm:$0xff]
    %v58 = vld [vmem:[%s0 + $0x1c0] sm:$0xff]
    %v59 = vld [vmem:[%s0 + $0x1c8] sm:$0xff]
    %v60 = vld [vmem:[%s0 + $0x1d0] sm:$0xff]
    %v61 = vld [vmem:[%s0 + $0x1e0] sm:$0xff]
    %v62 = vld [vmem:[%s0 + $0x1e8] sm:$0xff]
    %v63 = vld [vmem:[%s0 + $0x1f0] sm:$0xff]
    %v64 = vpack.c.bf16 %v17, %v16
    %v65 = vpack.c.bf16 %v19, %v18
    %v66 = vpack.c.bf16 %v21, %v20
    %v67 = vpack.c.bf16 %v23, %v22
    %v68 = vpack.c.bf16 %v25, %v24
    %v69 = vpack.c.bf16 %v27, %v26
    %v70 = vpack.c.bf16 %v29, %v28
    %v71 = vpack.c.bf16 %v31, %v30
    %v72 = vpack.c.bf16 %v33, %v32
    %v73 = vpack.c.bf16 %v35, %v34
    %v74 = vpack.c.bf16 %v37, %v36
    %v75 = vpack.c.bf16 %v39, %v38
    %v76 = vpack.c.bf16 %v41, %v40
    %v77 = vpack.c.bf16 %v43, %v42
    %v78 = vpack.c.bf16 %v45, %v44
    %v79 = vpack.c.bf16 %v47, %v46
    %v80 = vpack.c.bf16 %v49, %v48
    %v81 = vpack.c.bf16 %v51, %v50
    %v82 = vpack.c.bf16 %v53, %v52
    %v83 = vpack.c.bf16 %v55, %v54
    %v84 = vpack.c.bf16 %v57, %v56
    %v85 = vpack.c.bf16 %v59, %v58
    %v86 = vpack.c.bf16 %v61, %v60
    %v87 = vpack.c.bf16 %v63, %v62
    %v88 = vld [vmem:[%s1] sm:$0xf]
    %v89 = vld [vmem:[%s1 + $0x4] sm:$0xf]
    %v90 = vld [vmem:[%s1 + $0x8] sm:$0xf]
    %v91 = vld [vmem:[%s1 + $0xc] sm:$0xf]
    %v92 = vld [vmem:[%s1 + $0x10] sm:$0xf]
    %v93 = vld [vmem:[%s1 + $0x14] sm:$0xf]
    %v94 = vld [vmem:[%s1 + $0x18] sm:$0x1]
    %v95 = vld [vmem:[%s0 + $0x1] sm:$0xff]
    %v96 = vld [vmem:[%s0 + $0x9] sm:$0xff]
    %v97 = vld [vmem:[%s0 + $0x11] sm:$0xff]
    %v98 = vld [vmem:[%s0 + $0x21] sm:$0xff]
    %v99 = vld [vmem:[%s0 + $0x29] sm:$0xff]
    %v100 = vld [vmem:[%s0 + $0x31] sm:$0xff]
    %v101 = vld [vmem:[%s0 + $0x41] sm:$0xff]
    %v102 = vld [vmem:[%s0 + $0x49] sm:$0xff]
    %v103 = vld [vmem:[%s0 + $0x51] sm:$0xff]
    %v104 = vld [vmem:[%s0 + $0x61] sm:$0xff]
    %v105 = vld [vmem:[%s0 + $0x69] sm:$0xff]
    %v106 = vld [vmem:[%s0 + $0x71] sm:$0xff]
    %v107 = vld [vmem:[%s0 + $0x81] sm:$0xff]
    %v108 = vld [vmem:[%s0 + $0x89] sm:$0xff]
    %v109 = vld [vmem:[%s0 + $0x91] sm:$0xff]
    %v110 = vld [vmem:[%s0 + $0xa1] sm:$0xff]
    %v111 = vld [vmem:[%s0 + $0xa9] sm:$0xff]
    %v112 = vld [vmem:[%s0 + $0xb1] sm:$0xff]
    %v113 = vld [vmem:[%s0 + $0xc1] sm:$0xff]
    %v114 = vld [vmem:[%s0 + $0xc9] sm:$0xff]
    %v115 = vld [vmem:[%s0 + $0xd1] sm:$0xff]
    %v116 = vld [vmem:[%s0 + $0xe1] sm:$0xff]
    %v117 = vld [vmem:[%s0 + $0xe9] sm:$0xff]
    %v118 = vld [vmem:[%s0 + $0xf1] sm:$0xff]
    %v119 = vld [vmem:[%s0 + $0x101] sm:$0xff]
    %v120 = vld [vmem:[%s0 + $0x109] sm:$0xff]
    %v121 = vld [vmem:[%s0 + $0x111] sm:$0xff]
    %v122 = vld [vmem:[%s0 + $0x121] sm:$0xff]
    %v123 = vld [vmem:[%s0 + $0x129] sm:$0xff]
    %v124 = vld [vmem:[%s0 + $0x131] sm:$0xff]
    %v125 = vld [vmem:[%s0 + $0x141] sm:$0xff]
    %v126 = vld [vmem:[%s0 + $0x149] sm:$0xff]
    %v127 = vld [vmem:[%s0 + $0x151] sm:$0xff]
    %v128 = vld [vmem:[%s0 + $0x161] sm:$0xff]
    %v129 = vld [vmem:[%s0 + $0x169] sm:$0xff]
    %v130 = vld [vmem:[%s0 + $0x171] sm:$0xff]
    %v131 = vld [vmem:[%s0 + $0x181] sm:$0xff]
    %v132 = vld [vmem:[%s0 + $0x189] sm:$0xff]
    %v133 = vld [vmem:[%s0 + $0x191] sm:$0xff]
    %v134 = vld [vmem:[%s0 + $0x1a1] sm:$0xff]
    %v135 = vld [vmem:[%s0 + $0x1a9] sm:$0xff]
    %v136 = vld [vmem:[%s0 + $0x1b1] sm:$0xff]
    %v137 = vld [vmem:[%s0 + $0x1c1] sm:$0xff]
    %v138 = vld [vmem:[%s0 + $0x1c9] sm:$0xff]
    %v139 = vld [vmem:[%s0 + $0x1d1] sm:$0xff]
    %v140 = vld [vmem:[%s0 + $0x1e1] sm:$0xff]
    %v141 = vld [vmem:[%s0 + $0x1e9] sm:$0xff]
    %v142 = vld [vmem:[%s0 + $0x1f1] sm:$0xff]
    %v143 = vpack.c.bf16 %v96, %v95
    %v144 = vpack.c.bf16 %v98, %v97
    %v145 = vpack.c.bf16 %v100, %v99
    %v146 = vpack.c.bf16 %v102, %v101
    %v147 = vpack.c.bf16 %v104, %v103
    %v148 = vpack.c.bf16 %v106, %v105
    %v149 = vpack.c.bf16 %v108, %v107
    %v150 = vpack.c.bf16 %v110, %v109
    %v151 = vpack.c.bf16 %v112, %v111
    %v152 = vpack.c.bf16 %v114, %v113
    %v153 = vpack.c.bf16 %v116, %v115
    %v154 = vpack.c.bf16 %v118, %v117
    %v155 = vpack.c.bf16 %v120, %v119
    %v156 = vpack.c.bf16 %v122, %v121
    %v157 = vpack.c.bf16 %v124, %v123
    %v158 = vpack.c.bf16 %v126, %v125
    %v159 = vpack.c.bf16 %v128, %v127
    %v160 = vpack.c.bf16 %v130, %v129
    %v161 = vpack.c.bf16 %v132, %v131
    %v162 = vpack.c.bf16 %v134, %v133
    %v163 = vpack.c.bf16 %v136, %v135
    %v164 = vpack.c.bf16 %v138, %v137
    %v165 = vpack.c.bf16 %v140, %v139
    %v166 = vpack.c.bf16 %v142, %v141
    %s167 = scalar_lea.vmem %s1, 28
    %v168 = vld [vmem:[%s167] sm:$0xf]
    %v169 = vld [vmem:[%s167 + $0x4] sm:$0xf]
    %v170 = vld [vmem:[%s167 + $0x8] sm:$0xf]
    %v171 = vld [vmem:[%s167 + $0xc] sm:$0xf]
    %v172 = vld [vmem:[%s167 + $0x10] sm:$0xf]
    %v173 = vld [vmem:[%s167 + $0x14] sm:$0xf]
    %v174 = vld [vmem:[%s167 + $0x18] sm:$0x1]
    %v182 = vunpack.c.l.b16 %v168
    %v183 = vunpack.c.l.b16 %v169
    %v184 = vunpack.c.l.b16 %v170
    %v185 = vunpack.c.l.b16 %v171
    %v186 = vunpack.c.l.b16 %v172
    %v187 = vunpack.c.l.b16 %v173
    %v188 = vunpack.c.l.b16 %v174
    %v189 = vpack.c.b16 %v183, %v182
    %v190 = vpack.c.b16 %v185, %v184
    %v191 = vpack.c.b16 %v187, %v186
    %v192 = vpack.c.b16 %v188, %v188
    %vm196 = vcmask 408576
    %v198 = vsel %vm196, %v143, 0
    %v201 = vsel %vm196, %v144, 0
    %v204 = vsel %vm196, %v145, 0
    %v207 = vsel %vm196, %v146, 0
    %v210 = vsel %vm196, %v147, 0
    %v213 = vsel %vm196, %v148, 0
    %v216 = vsel %vm196, %v149, 0
    %v219 = vsel %vm196, %v150, 0
    %v222 = vsel %vm196, %v151, 0
    %v225 = vsel %vm196, %v152, 0
    %v228 = vsel %vm196, %v153, 0
    %v231 = vsel %vm196, %v154, 0
    %v234 = vsel %vm196, %v155, 0
    %v237 = vsel %vm196, %v156, 0
    %v240 = vsel %vm196, %v157, 0
    %v243 = vsel %vm196, %v158, 0
    %v246 = vsel %vm196, %v159, 0
    %v249 = vsel %vm196, %v160, 0
    %v252 = vsel %vm196, %v161, 0
    %v255 = vsel %vm196, %v162, 0
    %v258 = vsel %vm196, %v163, 0
    %v261 = vsel %vm196, %v164, 0
    %v264 = vsel %vm196, %v165, 0
    %v267 = vsel %vm196, %v166, 0
    %vm269 = vcmask 1040384
    %v271 = vsel %vm269, %v192, 0
    %273 = vmatprep.subr.bf16.mxu0 0
    %274 = vmatpush1.bf16.msra.mxu0 0
    %275 = vmatprep.subr.bf16.mxu0 0
    %276 = vmatpush1.bf16.msra.mxu0 0
    %277 = vmatprep.subr.bf16.mxu0 0
    %278 = vmatpush1.bf16.msra.mxu0 0
    %279 = vmatprep.subr.bf16.mxu0 0
    %280 = vmatpush1.bf16.msra.mxu0 0
    %281 = vmatprep.subr.bf16.mxu0 0
    %282 = vmatpush1.bf16.msra.mxu0 %v271
    %283 = vmatprep.subr.bf16.mxu0 0
    %284 = vmatpush1.bf16.msra.mxu0 %v191
    %285 = vmatprep.subr.bf16.mxu0 0
    %286 = vmatpush1.bf16.msra.mxu0 %v190
    %287 = vmatprep.subr.bf16.mxu0 0
    %288 = vmatpush1.bf16.msra.mxu0 %v189
    %289 = vmatprep.subr.bf16.mxu0 0
    %290 = vmatpush2.bf16.msra.mxu0 0
    %291 = vmatprep.subr.bf16.mxu0 0
    %292 = vmatpush2.bf16.msra.mxu0 0
    %293 = vmatprep.subr.bf16.mxu0 0
    %294 = vmatpush2.bf16.msra.mxu0 0
    %295 = vmatprep.subr.bf16.mxu0 0
    %296 = vmatpush2.bf16.msra.mxu0 0
    %297 = vmatprep.subr.bf16.mxu0 0
    %298 = vmatpush2.bf16.msra.mxu0 0
    %299 = vmatprep.subr.bf16.mxu0 0
    %300 = vmatpush2.bf16.msra.mxu0 0
    %301 = vmatprep.subr.bf16.mxu0 0
    %302 = vmatpush2.bf16.msra.mxu0 0
    %303 = vmatprep.subr.bf16.mxu0 0
    %304 = vmatpush2.bf16.msra.mxu0 0
    %305 = vmatprep.mubr.bf16.mxu0 0
    %306 = vmatmul.mubr.bf16.gmra.mxu0 %v198
    %v307 = vpop.f32.mrf.mxu0
    %v308 = vadd.f32 0.0, %v307
    %v309 = vpop.f32.mrf.mxu0
    %v310 = vpop.f32.mrf.mxu0
    %v311 = vadd.f32 0.0, %v310
    %v312 = vpop.f32.mrf.mxu0
    %313 = vmatprep.mubr.bf16.mxu0 0
    %314 = vmatmul.mubr.bf16.gmra.mxu0 %v201
    %v315 = vpop.f32.mrf.mxu0
    %v316 = vadd.f32 0.0, %v315
    %v317 = vpop.f32.mrf.mxu0
    %v318 = vpop.f32.mrf.mxu0
    %v319 = vadd.f32 0.0, %v318
    %v320 = vpop.f32.mrf.mxu0
    %321 = vmatprep.mubr.bf16.mxu0 0
    %322 = vmatmul.mubr.bf16.gmra.mxu0 %v204
    %v323 = vpop.f32.mrf.mxu0
    %v324 = vadd.f32 0.0, %v323
    %v325 = vpop.f32.mrf.mxu0
    %v326 = vpop.f32.mrf.mxu0
    %v327 = vadd.f32 0.0, %v326
    %v328 = vpop.f32.mrf.mxu0
    %329 = vmatprep.mubr.bf16.mxu0 0
    %330 = vmatmul.mubr.bf16.gmra.mxu0 %v207
    %v331 = vpop.f32.mrf.mxu0
    %v332 = vadd.f32 0.0, %v331
    %v333 = vpop.f32.mrf.mxu0
    %v334 = vpop.f32.mrf.mxu0
    %v335 = vadd.f32 0.0, %v334
    %v336 = vpop.f32.mrf.mxu0
    %337 = vmatprep.mubr.bf16.mxu0 0
    %338 = vmatmul.mubr.bf16.gmra.mxu0 %v210
    %v339 = vpop.f32.mrf.mxu0
    %v340 = vadd.f32 0.0, %v339
    %v341 = vpop.f32.mrf.mxu0
    %v342 = vpop.f32.mrf.mxu0
    %v343 = vadd.f32 0.0, %v342
    %v344 = vpop.f32.mrf.mxu0
    %345 = vmatprep.mubr.bf16.mxu0 0
    %346 = vmatmul.mubr.bf16.gmra.mxu0 %v213
    %v347 = vpop.f32.mrf.mxu0
    %v348 = vadd.f32 0.0, %v347
    %v349 = vpop.f32.mrf.mxu0
    %v350 = vpop.f32.mrf.mxu0
    %v351 = vadd.f32 0.0, %v350
    %v352 = vpop.f32.mrf.mxu0
    %353 = vmatprep.mubr.bf16.mxu0 0
    %354 = vmatmul.mubr.bf16.gmra.mxu0 %v216
    %v355 = vpop.f32.mrf.mxu0
    %v356 = vadd.f32 0.0, %v355
    %v357 = vpop.f32.mrf.mxu0
    %v358 = vpop.f32.mrf.mxu0
    %v359 = vadd.f32 0.0, %v358
    %v360 = vpop.f32.mrf.mxu0
    %361 = vmatprep.mubr.bf16.mxu0 0
    %362 = vmatmul.mubr.bf16.gmra.mxu0 %v219
    %v363 = vpop.f32.mrf.mxu0
    %v364 = vadd.f32 0.0, %v363
    %v365 = vpop.f32.mrf.mxu0
    %v366 = vpop.f32.mrf.mxu0
    %v367 = vadd.f32 0.0, %v366
    %v368 = vpop.f32.mrf.mxu0
    %369 = vmatprep.mubr.bf16.mxu0 0
    %370 = vmatmul.mubr.bf16.gmra.mxu0 %v222
    %v371 = vpop.f32.mrf.mxu0
    %v372 = vadd.f32 0.0, %v371
    %v373 = vpop.f32.mrf.mxu0
    %v374 = vpop.f32.mrf.mxu0
    %v375 = vadd.f32 0.0, %v374
    %v376 = vpop.f32.mrf.mxu0
    %377 = vmatprep.mubr.bf16.mxu0 0
    %378 = vmatmul.mubr.bf16.gmra.mxu0 %v225
    %v379 = vpop.f32.mrf.mxu0
    %v380 = vadd.f32 0.0, %v379
    %v381 = vpop.f32.mrf.mxu0
    %v382 = vpop.f32.mrf.mxu0
    %v383 = vadd.f32 0.0, %v382
    %v384 = vpop.f32.mrf.mxu0
    %385 = vmatprep.mubr.bf16.mxu0 0
    %386 = vmatmul.mubr.bf16.gmra.mxu0 %v228
    %v387 = vpop.f32.mrf.mxu0
    %v388 = vadd.f32 0.0, %v387
    %v389 = vpop.f32.mrf.mxu0
    %v390 = vpop.f32.mrf.mxu0
    %v391 = vadd.f32 0.0, %v390
    %v392 = vpop.f32.mrf.mxu0
    %393 = vmatprep.mubr.bf16.mxu0 0
    %394 = vmatmul.mubr.bf16.gmra.mxu0 %v231
    %v395 = vpop.f32.mrf.mxu0
    %v396 = vadd.f32 0.0, %v395
    %v397 = vpop.f32.mrf.mxu0
    %v398 = vpop.f32.mrf.mxu0
    %v399 = vadd.f32 0.0, %v398
    %v400 = vpop.f32.mrf.mxu0
    %401 = vmatprep.mubr.bf16.mxu0 0
    %402 = vmatmul.mubr.bf16.gmra.mxu0 %v234
    %v403 = vpop.f32.mrf.mxu0
    %v404 = vadd.f32 0.0, %v403
    %v405 = vpop.f32.mrf.mxu0
    %v406 = vpop.f32.mrf.mxu0
    %v407 = vadd.f32 0.0, %v406
    %v408 = vpop.f32.mrf.mxu0
    %409 = vmatprep.mubr.bf16.mxu0 0
    %410 = vmatmul.mubr.bf16.gmra.mxu0 %v237
    %v411 = vpop.f32.mrf.mxu0
    %v412 = vadd.f32 0.0, %v411
    %v413 = vpop.f32.mrf.mxu0
    %v414 = vpop.f32.mrf.mxu0
    %v415 = vadd.f32 0.0, %v414
    %v416 = vpop.f32.mrf.mxu0
    %417 = vmatprep.mubr.bf16.mxu0 0
    %418 = vmatmul.mubr.bf16.gmra.mxu0 %v240
    %v419 = vpop.f32.mrf.mxu0
    %v420 = vadd.f32 0.0, %v419
    %v421 = vpop.f32.mrf.mxu0
    %v422 = vpop.f32.mrf.mxu0
    %v423 = vadd.f32 0.0, %v422
    %v424 = vpop.f32.mrf.mxu0
    %425 = vmatprep.mubr.bf16.mxu0 0
    %426 = vmatmul.mubr.bf16.gmra.mxu0 %v243
    %v427 = vpop.f32.mrf.mxu0
    %v428 = vadd.f32 0.0, %v427
    %v429 = vpop.f32.mrf.mxu0
    %v430 = vpop.f32.mrf.mxu0
    %v431 = vadd.f32 0.0, %v430
    %v432 = vpop.f32.mrf.mxu0
    %433 = vmatprep.mubr.bf16.mxu0 0
    %434 = vmatmul.mubr.bf16.gmra.mxu0 %v246
    %v435 = vpop.f32.mrf.mxu0
    %v436 = vadd.f32 0.0, %v435
    %v437 = vpop.f32.mrf.mxu0
    %v438 = vpop.f32.mrf.mxu0
    %v439 = vadd.f32 0.0, %v438
    %v440 = vpop.f32.mrf.mxu0
    %441 = vmatprep.mubr.bf16.mxu0 0
    %442 = vmatmul.mubr.bf16.gmra.mxu0 %v249
    %v443 = vpop.f32.mrf.mxu0
    %v444 = vadd.f32 0.0, %v443
    %v445 = vpop.f32.mrf.mxu0
    %v446 = vpop.f32.mrf.mxu0
    %v447 = vadd.f32 0.0, %v446
    %v448 = vpop.f32.mrf.mxu0
    %449 = vmatprep.mubr.bf16.mxu0 0
    %450 = vmatmul.mubr.bf16.gmra.mxu0 %v252
    %v451 = vpop.f32.mrf.mxu0
    %v452 = vadd.f32 0.0, %v451
    %v453 = vpop.f32.mrf.mxu0
    %v454 = vpop.f32.mrf.mxu0
    %v455 = vadd.f32 0.0, %v454
    %v456 = vpop.f32.mrf.mxu0
    %457 = vmatprep.mubr.bf16.mxu0 0
    %458 = vmatmul.mubr.bf16.gmra.mxu0 %v255
    %v459 = vpop.f32.mrf.mxu0
    %v460 = vadd.f32 0.0, %v459
    %v461 = vpop.f32.mrf.mxu0
    %v462 = vpop.f32.mrf.mxu0
    %v463 = vadd.f32 0.0, %v462
    %v464 = vpop.f32.mrf.mxu0
    %465 = vmatprep.mubr.bf16.mxu0 0
    %466 = vmatmul.mubr.bf16.gmra.mxu0 %v258
    %v467 = vpop.f32.mrf.mxu0
    %v468 = vadd.f32 0.0, %v467
    %v469 = vpop.f32.mrf.mxu0
    %v470 = vpop.f32.mrf.mxu0
    %v471 = vadd.f32 0.0, %v470
    %v472 = vpop.f32.mrf.mxu0
    %473 = vmatprep.mubr.bf16.mxu0 0
    %474 = vmatmul.mubr.bf16.gmra.mxu0 %v261
    %v475 = vpop.f32.mrf.mxu0
    %v476 = vadd.f32 0.0, %v475
    %v477 = vpop.f32.mrf.mxu0
    %v478 = vpop.f32.mrf.mxu0
    %v479 = vadd.f32 0.0, %v478
    %v480 = vpop.f32.mrf.mxu0
    %481 = vmatprep.mubr.bf16.mxu0 0
    %482 = vmatmul.mubr.bf16.gmra.mxu0 %v264
    %v483 = vpop.f32.mrf.mxu0
    %v484 = vadd.f32 0.0, %v483
    %v485 = vpop.f32.mrf.mxu0
    %v486 = vpop.f32.mrf.mxu0
    %v487 = vadd.f32 0.0, %v486
    %v488 = vpop.f32.mrf.mxu0
    %489 = vmatprep.mubr.bf16.mxu0 0
    %490 = vmatmul.mubr.bf16.gmra.mxu0 %v267
    %v491 = vpop.f32.mrf.mxu0
    %v492 = vadd.f32 0.0, %v491
    %v493 = vpop.f32.mrf.mxu0
    %v494 = vpop.f32.mrf.mxu0
    %v495 = vadd.f32 0.0, %v494
    %v496 = vpop.f32.mrf.mxu0
    %497 = vdwg.mxu0
    %v505 = vunpack.c.l.b16 %v88
    %v506 = vunpack.c.l.b16 %v89
    %v507 = vunpack.c.l.b16 %v90
    %v508 = vunpack.c.l.b16 %v91
    %v509 = vunpack.c.l.b16 %v92
    %v510 = vunpack.c.l.b16 %v93
    %v511 = vunpack.c.l.b16 %v94
    %v512 = vpack.c.b16 %v506, %v505
    %v513 = vpack.c.b16 %v508, %v507
    %v514 = vpack.c.b16 %v510, %v509
    %v515 = vpack.c.b16 %v511, %v511
    %v520 = vsel %vm196, %v64, 0
    %v523 = vsel %vm196, %v65, 0
    %v526 = vsel %vm196, %v66, 0
    %v529 = vsel %vm196, %v67, 0
    %v532 = vsel %vm196, %v68, 0
    %v535 = vsel %vm196, %v69, 0
    %v538 = vsel %vm196, %v70, 0
    %v541 = vsel %vm196, %v71, 0
    %v544 = vsel %vm196, %v72, 0
    %v547 = vsel %vm196, %v73, 0
    %v550 = vsel %vm196, %v74, 0
    %v553 = vsel %vm196, %v75, 0
    %v556 = vsel %vm196, %v76, 0
    %v559 = vsel %vm196, %v77, 0
    %v562 = vsel %vm196, %v78, 0
    %v565 = vsel %vm196, %v79, 0
    %v568 = vsel %vm196, %v80, 0
    %v571 = vsel %vm196, %v81, 0
    %v574 = vsel %vm196, %v82, 0
    %v577 = vsel %vm196, %v83, 0
    %v580 = vsel %vm196, %v84, 0
    %v583 = vsel %vm196, %v85, 0
    %v586 = vsel %vm196, %v86, 0
    %v589 = vsel %vm196, %v87, 0
    %v592 = vsel %vm269, %v515, 0
    %594 = vmatprep.subr.bf16.mxu0 0
    %595 = vmatpush1.bf16.msra.mxu0 0
    %596 = vmatprep.subr.bf16.mxu0 0
    %597 = vmatpush1.bf16.msra.mxu0 0
    %598 = vmatprep.subr.bf16.mxu0 0
    %599 = vmatpush1.bf16.msra.mxu0 0
    %600 = vmatprep.subr.bf16.mxu0 0
    %601 = vmatpush1.bf16.msra.mxu0 0
    %602 = vmatprep.subr.bf16.mxu0 0
    %603 = vmatpush1.bf16.msra.mxu0 %v592
    %604 = vmatprep.subr.bf16.mxu0 0
    %605 = vmatpush1.bf16.msra.mxu0 %v514
    %606 = vmatprep.subr.bf16.mxu0 0
    %607 = vmatpush1.bf16.msra.mxu0 %v513
    %608 = vmatprep.subr.bf16.mxu0 0
    %609 = vmatpush1.bf16.msra.mxu0 %v512
    %610 = vmatprep.subr.bf16.mxu0 0
    %611 = vmatpush2.bf16.msra.mxu0 0
    %612 = vmatprep.subr.bf16.mxu0 0
    %613 = vmatpush2.bf16.msra.mxu0 0
    %614 = vmatprep.subr.bf16.mxu0 0
    %615 = vmatpush2.bf16.msra.mxu0 0
    %616 = vmatprep.subr.bf16.mxu0 0
    %617 = vmatpush2.bf16.msra.mxu0 0
    %618 = vmatprep.subr.bf16.mxu0 0
    %619 = vmatpush2.bf16.msra.mxu0 0
    %620 = vmatprep.subr.bf16.mxu0 0
    %621 = vmatpush2.bf16.msra.mxu0 0
    %622 = vmatprep.subr.bf16.mxu0 0
    %623 = vmatpush2.bf16.msra.mxu0 0
    %624 = vmatprep.subr.bf16.mxu0 0
    %625 = vmatpush2.bf16.msra.mxu0 0
    %626 = vmatprep.mubr.bf16.mxu0 0
    %627 = vmatmul.mubr.bf16.gmra.mxu0 %v520
    %v628 = vpop.f32.mrf.mxu0
    %v629 = vadd.f32 %v308, %v628
    %v630 = vpop.f32.mrf.mxu0
    %v631 = vpop.f32.mrf.mxu0
    %v632 = vadd.f32 %v311, %v631
    %v633 = vpop.f32.mrf.mxu0
    %634 = vmatprep.mubr.bf16.mxu0 0
    %635 = vmatmul.mubr.bf16.gmra.mxu0 %v523
    %v636 = vpop.f32.mrf.mxu0
    %v637 = vadd.f32 %v316, %v636
    %v638 = vpop.f32.mrf.mxu0
    %v639 = vpop.f32.mrf.mxu0
    %v640 = vadd.f32 %v319, %v639
    %v641 = vpop.f32.mrf.mxu0
    %642 = vmatprep.mubr.bf16.mxu0 0
    %643 = vmatmul.mubr.bf16.gmra.mxu0 %v526
    %v644 = vpop.f32.mrf.mxu0
    %v645 = vadd.f32 %v324, %v644
    %v646 = vpop.f32.mrf.mxu0
    %v647 = vpop.f32.mrf.mxu0
    %v648 = vadd.f32 %v327, %v647
    %v649 = vpop.f32.mrf.mxu0
    %650 = vmatprep.mubr.bf16.mxu0 0
    %651 = vmatmul.mubr.bf16.gmra.mxu0 %v529
    %v652 = vpop.f32.mrf.mxu0
    %v653 = vadd.f32 %v332, %v652
    %v654 = vpop.f32.mrf.mxu0
    %v655 = vpop.f32.mrf.mxu0
    %v656 = vadd.f32 %v335, %v655
    %v657 = vpop.f32.mrf.mxu0
    %658 = vmatprep.mubr.bf16.mxu0 0
    %659 = vmatmul.mubr.bf16.gmra.mxu0 %v532
    %v660 = vpop.f32.mrf.mxu0
    %v661 = vadd.f32 %v340, %v660
    %v662 = vpop.f32.mrf.mxu0
    %v663 = vpop.f32.mrf.mxu0
    %v664 = vadd.f32 %v343, %v663
    %v665 = vpop.f32.mrf.mxu0
    %666 = vmatprep.mubr.bf16.mxu0 0
    %667 = vmatmul.mubr.bf16.gmra.mxu0 %v535
    %v668 = vpop.f32.mrf.mxu0
    %v669 = vadd.f32 %v348, %v668
    %v670 = vpop.f32.mrf.mxu0
    %v671 = vpop.f32.mrf.mxu0
    %v672 = vadd.f32 %v351, %v671
    %v673 = vpop.f32.mrf.mxu0
    %674 = vmatprep.mubr.bf16.mxu0 0
    %675 = vmatmul.mubr.bf16.gmra.mxu0 %v538
    %v676 = vpop.f32.mrf.mxu0
    %v677 = vadd.f32 %v356, %v676
    %v678 = vpop.f32.mrf.mxu0
    %v679 = vpop.f32.mrf.mxu0
    %v680 = vadd.f32 %v359, %v679
    %v681 = vpop.f32.mrf.mxu0
    %682 = vmatprep.mubr.bf16.mxu0 0
    %683 = vmatmul.mubr.bf16.gmra.mxu0 %v541
    %v684 = vpop.f32.mrf.mxu0
    %v685 = vadd.f32 %v364, %v684
    %v686 = vpop.f32.mrf.mxu0
    %v687 = vpop.f32.mrf.mxu0
    %v688 = vadd.f32 %v367, %v687
    %v689 = vpop.f32.mrf.mxu0
    %690 = vmatprep.mubr.bf16.mxu0 0
    %691 = vmatmul.mubr.bf16.gmra.mxu0 %v544
    %v692 = vpop.f32.mrf.mxu0
    %v693 = vadd.f32 %v372, %v692
    %v694 = vpop.f32.mrf.mxu0
    %v695 = vpop.f32.mrf.mxu0
    %v696 = vadd.f32 %v375, %v695
    %v697 = vpop.f32.mrf.mxu0
    %698 = vmatprep.mubr.bf16.mxu0 0
    %699 = vmatmul.mubr.bf16.gmra.mxu0 %v547
    %v700 = vpop.f32.mrf.mxu0
    %v701 = vadd.f32 %v380, %v700
    %v702 = vpop.f32.mrf.mxu0
    %v703 = vpop.f32.mrf.mxu0
    %v704 = vadd.f32 %v383, %v703
    %v705 = vpop.f32.mrf.mxu0
    %706 = vmatprep.mubr.bf16.mxu0 0
    %707 = vmatmul.mubr.bf16.gmra.mxu0 %v550
    %v708 = vpop.f32.mrf.mxu0
    %v709 = vadd.f32 %v388, %v708
    %v710 = vpop.f32.mrf.mxu0
    %v711 = vpop.f32.mrf.mxu0
    %v712 = vadd.f32 %v391, %v711
    %v713 = vpop.f32.mrf.mxu0
    %714 = vmatprep.mubr.bf16.mxu0 0
    %715 = vmatmul.mubr.bf16.gmra.mxu0 %v553
    %v716 = vpop.f32.mrf.mxu0
    %v717 = vadd.f32 %v396, %v716
    %v718 = vpop.f32.mrf.mxu0
    %v719 = vpop.f32.mrf.mxu0
    %v720 = vadd.f32 %v399, %v719
    %v721 = vpop.f32.mrf.mxu0
    %722 = vmatprep.mubr.bf16.mxu0 0
    %723 = vmatmul.mubr.bf16.gmra.mxu0 %v556
    %v724 = vpop.f32.mrf.mxu0
    %v725 = vadd.f32 %v404, %v724
    %v726 = vpop.f32.mrf.mxu0
    %v727 = vpop.f32.mrf.mxu0
    %v728 = vadd.f32 %v407, %v727
    %v729 = vpop.f32.mrf.mxu0
    %730 = vmatprep.mubr.bf16.mxu0 0
    %731 = vmatmul.mubr.bf16.gmra.mxu0 %v559
    %v732 = vpop.f32.mrf.mxu0
    %v733 = vadd.f32 %v412, %v732
    %v734 = vpop.f32.mrf.mxu0
    %v735 = vpop.f32.mrf.mxu0
    %v736 = vadd.f32 %v415, %v735
    %v737 = vpop.f32.mrf.mxu0
    %738 = vmatprep.mubr.bf16.mxu0 0
    %739 = vmatmul.mubr.bf16.gmra.mxu0 %v562
    %v740 = vpop.f32.mrf.mxu0
    %v741 = vadd.f32 %v420, %v740
    %v742 = vpop.f32.mrf.mxu0
    %v743 = vpop.f32.mrf.mxu0
    %v744 = vadd.f32 %v423, %v743
    %v745 = vpop.f32.mrf.mxu0
    %746 = vmatprep.mubr.bf16.mxu0 0
    %747 = vmatmul.mubr.bf16.gmra.mxu0 %v565
    %v748 = vpop.f32.mrf.mxu0
    %v749 = vadd.f32 %v428, %v748
    %v750 = vpop.f32.mrf.mxu0
    %v751 = vpop.f32.mrf.mxu0
    %v752 = vadd.f32 %v431, %v751
    %v753 = vpop.f32.mrf.mxu0
    %754 = vmatprep.mubr.bf16.mxu0 0
    %755 = vmatmul.mubr.bf16.gmra.mxu0 %v568
    %v756 = vpop.f32.mrf.mxu0
    %v757 = vadd.f32 %v436, %v756
    %v758 = vpop.f32.mrf.mxu0
    %v759 = vpop.f32.mrf.mxu0
    %v760 = vadd.f32 %v439, %v759
    %v761 = vpop.f32.mrf.mxu0
    %762 = vmatprep.mubr.bf16.mxu0 0
    %763 = vmatmul.mubr.bf16.gmra.mxu0 %v571
    %v764 = vpop.f32.mrf.mxu0
    %v765 = vadd.f32 %v444, %v764
    %v766 = vpop.f32.mrf.mxu0
    %v767 = vpop.f32.mrf.mxu0
    %v768 = vadd.f32 %v447, %v767
    %v769 = vpop.f32.mrf.mxu0
    %770 = vmatprep.mubr.bf16.mxu0 0
    %771 = vmatmul.mubr.bf16.gmra.mxu0 %v574
    %v772 = vpop.f32.mrf.mxu0
    %v773 = vadd.f32 %v452, %v772
    %v774 = vpop.f32.mrf.mxu0
    %v775 = vpop.f32.mrf.mxu0
    %v776 = vadd.f32 %v455, %v775
    %v777 = vpop.f32.mrf.mxu0
    %778 = vmatprep.mubr.bf16.mxu0 0
    %779 = vmatmul.mubr.bf16.gmra.mxu0 %v577
    %v780 = vpop.f32.mrf.mxu0
    %v781 = vadd.f32 %v460, %v780
    %v782 = vpop.f32.mrf.mxu0
    %v783 = vpop.f32.mrf.mxu0
    %v784 = vadd.f32 %v463, %v783
    %v785 = vpop.f32.mrf.mxu0
    %786 = vmatprep.mubr.bf16.mxu0 0
    %787 = vmatmul.mubr.bf16.gmra.mxu0 %v580
    %v788 = vpop.f32.mrf.mxu0
    %v789 = vadd.f32 %v468, %v788
    %v790 = vpop.f32.mrf.mxu0
    %v791 = vpop.f32.mrf.mxu0
    %v792 = vadd.f32 %v471, %v791
    %v793 = vpop.f32.mrf.mxu0
    %794 = vmatprep.mubr.bf16.mxu0 0
    %795 = vmatmul.mubr.bf16.gmra.mxu0 %v583
    %v796 = vpop.f32.mrf.mxu0
    %v797 = vadd.f32 %v476, %v796
    %v798 = vpop.f32.mrf.mxu0
    %v799 = vpop.f32.mrf.mxu0
    %v800 = vadd.f32 %v479, %v799
    %v801 = vpop.f32.mrf.mxu0
    %802 = vmatprep.mubr.bf16.mxu0 0
    %803 = vmatmul.mubr.bf16.gmra.mxu0 %v586
    %v804 = vpop.f32.mrf.mxu0
    %v805 = vadd.f32 %v484, %v804
    %v806 = vpop.f32.mrf.mxu0
    %v807 = vpop.f32.mrf.mxu0
    %v808 = vadd.f32 %v487, %v807
    %v809 = vpop.f32.mrf.mxu0
    %810 = vmatprep.mubr.bf16.mxu0 0
    %811 = vmatmul.mubr.bf16.gmra.mxu0 %v589
    %v812 = vpop.f32.mrf.mxu0
    %v813 = vadd.f32 %v492, %v812
    %v814 = vpop.f32.mrf.mxu0
    %v815 = vpop.f32.mrf.mxu0
    %v816 = vadd.f32 %v495, %v815
    %v817 = vpop.f32.mrf.mxu0
    %818 = vdwg.mxu0
    %v819 = vld [vmem:[%s0 + $0x2] sm:$0xff]
    %v820 = vld [vmem:[%s0 + $0xa] sm:$0xff]
    %v821 = vld [vmem:[%s0 + $0x12] sm:$0xff]
    %v822 = vld [vmem:[%s0 + $0x22] sm:$0xff]
    %v823 = vld [vmem:[%s0 + $0x2a] sm:$0xff]
    %v824 = vld [vmem:[%s0 + $0x32] sm:$0xff]
    %v825 = vld [vmem:[%s0 + $0x42] sm:$0xff]
    %v826 = vld [vmem:[%s0 + $0x4a] sm:$0xff]
    %v827 = vld [vmem:[%s0 + $0x52] sm:$0xff]
    %v828 = vld [vmem:[%s0 + $0x62] sm:$0xff]
    %v829 = vld [vmem:[%s0 + $0x6a] sm:$0xff]
    %v830 = vld [vmem:[%s0 + $0x72] sm:$0xff]
    %v831 = vld [vmem:[%s0 + $0x82] sm:$0xff]
    %v832 = vld [vmem:[%s0 + $0x8a] sm:$0xff]
    %v833 = vld [vmem:[%s0 + $0x92] sm:$0xff]
    %v834 = vld [vmem:[%s0 + $0xa2] sm:$0xff]
    %v835 = vld [vmem:[%s0 + $0xaa] sm:$0xff]
    %v836 = vld [vmem:[%s0 + $0xb2] sm:$0xff]
    %v837 = vld [vmem:[%s0 + $0xc2] sm:$0xff]
    %v838 = vld [vmem:[%s0 + $0xca] sm:$0xff]
    %v839 = vld [vmem:[%s0 + $0xd2] sm:$0xff]
    %v840 = vld [vmem:[%s0 + $0xe2] sm:$0xff]
    %v841 = vld [vmem:[%s0 + $0xea] sm:$0xff]
    %v842 = vld [vmem:[%s0 + $0xf2] sm:$0xff]
    %v843 = vld [vmem:[%s0 + $0x102] sm:$0xff]
    %v844 = vld [vmem:[%s0 + $0x10a] sm:$0xff]
    %v845 = vld [vmem:[%s0 + $0x112] sm:$0xff]
    %v846 = vld [vmem:[%s0 + $0x122] sm:$0xff]
    %v847 = vld [vmem:[%s0 + $0x12a] sm:$0xff]
    %v848 = vld [vmem:[%s0 + $0x132] sm:$0xff]
    %v849 = vld [vmem:[%s0 + $0x142] sm:$0xff]
    %v850 = vld [vmem:[%s0 + $0x14a] sm:$0xff]
    %v851 = vld [vmem:[%s0 + $0x152] sm:$0xff]
    %v852 = vld [vmem:[%s0 + $0x162] sm:$0xff]
    %v853 = vld [vmem:[%s0 + $0x16a] sm:$0xff]
    %v854 = vld [vmem:[%s0 + $0x172] sm:$0xff]
    %v855 = vld [vmem:[%s0 + $0x182] sm:$0xff]
    %v856 = vld [vmem:[%s0 + $0x18a] sm:$0xff]
    %v857 = vld [vmem:[%s0 + $0x192] sm:$0xff]
    %v858 = vld [vmem:[%s0 + $0x1a2] sm:$0xff]
    %v859 = vld [vmem:[%s0 + $0x1aa] sm:$0xff]
    %v860 = vld [vmem:[%s0 + $0x1b2] sm:$0xff]
    %v861 = vld [vmem:[%s0 + $0x1c2] sm:$0xff]
    %v862 = vld [vmem:[%s0 + $0x1ca] sm:$0xff]
    %v863 = vld [vmem:[%s0 + $0x1d2] sm:$0xff]
    %v864 = vld [vmem:[%s0 + $0x1e2] sm:$0xff]
    %v865 = vld [vmem:[%s0 + $0x1ea] sm:$0xff]
    %v866 = vld [vmem:[%s0 + $0x1f2] sm:$0xff]
    %v867 = vpack.c.bf16 %v820, %v819
    %v868 = vpack.c.bf16 %v822, %v821
    %v869 = vpack.c.bf16 %v824, %v823
    %v870 = vpack.c.bf16 %v826, %v825
    %v871 = vpack.c.bf16 %v828, %v827
    %v872 = vpack.c.bf16 %v830, %v829
    %v873 = vpack.c.bf16 %v832, %v831
    %v874 = vpack.c.bf16 %v834, %v833
    %v875 = vpack.c.bf16 %v836, %v835
    %v876 = vpack.c.bf16 %v838, %v837
    %v877 = vpack.c.bf16 %v840, %v839
    %v878 = vpack.c.bf16 %v842, %v841
    %v879 = vpack.c.bf16 %v844, %v843
    %v880 = vpack.c.bf16 %v846, %v845
    %v881 = vpack.c.bf16 %v848, %v847
    %v882 = vpack.c.bf16 %v850, %v849
    %v883 = vpack.c.bf16 %v852, %v851
    %v884 = vpack.c.bf16 %v854, %v853
    %v885 = vpack.c.bf16 %v856, %v855
    %v886 = vpack.c.bf16 %v858, %v857
    %v887 = vpack.c.bf16 %v860, %v859
    %v888 = vpack.c.bf16 %v862, %v861
    %v889 = vpack.c.bf16 %v864, %v863
    %v890 = vpack.c.bf16 %v866, %v865
    %s891 = scalar_lea.vmem %s1, 56
    %v892 = vld [vmem:[%s891] sm:$0xf]
    %v893 = vld [vmem:[%s891 + $0x4] sm:$0xf]
    %v894 = vld [vmem:[%s891 + $0x8] sm:$0xf]
    %v895 = vld [vmem:[%s891 + $0xc] sm:$0xf]
    %v896 = vld [vmem:[%s891 + $0x10] sm:$0xf]
    %v897 = vld [vmem:[%s891 + $0x14] sm:$0xf]
    %v898 = vld [vmem:[%s891 + $0x18] sm:$0x1]
    %v906 = vunpack.c.l.b16 %v892
    %v907 = vunpack.c.l.b16 %v893
    %v908 = vunpack.c.l.b16 %v894
    %v909 = vunpack.c.l.b16 %v895
    %v910 = vunpack.c.l.b16 %v896
    %v911 = vunpack.c.l.b16 %v897
    %v912 = vunpack.c.l.b16 %v898
    %v913 = vpack.c.b16 %v907, %v906
    %v914 = vpack.c.b16 %v909, %v908
    %v915 = vpack.c.b16 %v911, %v910
    %v916 = vpack.c.b16 %v912, %v912
    %v921 = vsel %vm196, %v867, 0
    %v924 = vsel %vm196, %v868, 0
    %v927 = vsel %vm196, %v869, 0
    %v930 = vsel %vm196, %v870, 0
    %v933 = vsel %vm196, %v871, 0
    %v936 = vsel %vm196, %v872, 0
    %v939 = vsel %vm196, %v873, 0
    %v942 = vsel %vm196, %v874, 0
    %v945 = vsel %vm196, %v875, 0
    %v948 = vsel %vm196, %v876, 0
    %v951 = vsel %vm196, %v877, 0
    %v954 = vsel %vm196, %v878, 0
    %v957 = vsel %vm196, %v879, 0
    %v960 = vsel %vm196, %v880, 0
    %v963 = vsel %vm196, %v881, 0
    %v966 = vsel %vm196, %v882, 0
    %v969 = vsel %vm196, %v883, 0
    %v972 = vsel %vm196, %v884, 0
    %v975 = vsel %vm196, %v885, 0
    %v978 = vsel %vm196, %v886, 0
    %v981 = vsel %vm196, %v887, 0
    %v984 = vsel %vm196, %v888, 0
    %v987 = vsel %vm196, %v889, 0
    %v990 = vsel %vm196, %v890, 0
    %v993 = vsel %vm269, %v916, 0
    %995 = vmatprep.subr.bf16.mxu0 0
    %996 = vmatpush1.bf16.msra.mxu0 0
    %997 = vmatprep.subr.bf16.mxu0 0
    %998 = vmatpush1.bf16.msra.mxu0 0
    %999 = vmatprep.subr.bf16.mxu0 0
    %1000 = vmatpush1.bf16.msra.mxu0 0
    %1001 = vmatprep.subr.bf16.mxu0 0
    %1002 = vmatpush1.bf16.msra.mxu0 0
    %1003 = vmatprep.subr.bf16.mxu0 0
    %1004 = vmatpush1.bf16.msra.mxu0 %v993
    %1005 = vmatprep.subr.bf16.mxu0 0
    %1006 = vmatpush1.bf16.msra.mxu0 %v915
    %1007 = vmatprep.subr.bf16.mxu0 0
    %1008 = vmatpush1.bf16.msra.mxu0 %v914
    %1009 = vmatprep.subr.bf16.mxu0 0
    %1010 = vmatpush1.bf16.msra.mxu0 %v913
    %1011 = vmatprep.subr.bf16.mxu0 0
    %1012 = vmatpush2.bf16.msra.mxu0 0
    %1013 = vmatprep.subr.bf16.mxu0 0
    %1014 = vmatpush2.bf16.msra.mxu0 0
    %1015 = vmatprep.subr.bf16.mxu0 0
    %1016 = vmatpush2.bf16.msra.mxu0 0
    %1017 = vmatprep.subr.bf16.mxu0 0
    %1018 = vmatpush2.bf16.msra.mxu0 0
    %1019 = vmatprep.subr.bf16.mxu0 0
    %1020 = vmatpush2.bf16.msra.mxu0 0
    %1021 = vmatprep.subr.bf16.mxu0 0
    %1022 = vmatpush2.bf16.msra.mxu0 0
    %1023 = vmatprep.subr.bf16.mxu0 0
    %1024 = vmatpush2.bf16.msra.mxu0 0
    %1025 = vmatprep.subr.bf16.mxu0 0
    %1026 = vmatpush2.bf16.msra.mxu0 0
    %1027 = vmatprep.mubr.bf16.mxu0 0
    %1028 = vmatmul.mubr.bf16.gmra.mxu0 %v921
    %v1029 = vpop.f32.mrf.mxu0
    %v1030 = vadd.f32 0.0, %v1029
    %v1031 = vpop.f32.mrf.mxu0
    %v1032 = vpop.f32.mrf.mxu0
    %v1033 = vadd.f32 0.0, %v1032
    %v1034 = vpop.f32.mrf.mxu0
    %1035 = vmatprep.mubr.bf16.mxu0 0
    %1036 = vmatmul.mubr.bf16.gmra.mxu0 %v924
    %v1037 = vpop.f32.mrf.mxu0
    %v1038 = vadd.f32 0.0, %v1037
    %v1039 = vpop.f32.mrf.mxu0
    %v1040 = vpop.f32.mrf.mxu0
    %v1041 = vadd.f32 0.0, %v1040
    %v1042 = vpop.f32.mrf.mxu0
    %1043 = vmatprep.mubr.bf16.mxu0 0
    %1044 = vmatmul.mubr.bf16.gmra.mxu0 %v927
    %v1045 = vpop.f32.mrf.mxu0
    %v1046 = vadd.f32 0.0, %v1045
    %v1047 = vpop.f32.mrf.mxu0
    %v1048 = vpop.f32.mrf.mxu0
    %v1049 = vadd.f32 0.0, %v1048
    %v1050 = vpop.f32.mrf.mxu0
    %1051 = vmatprep.mubr.bf16.mxu0 0
    %1052 = vmatmul.mubr.bf16.gmra.mxu0 %v930
    %v1053 = vpop.f32.mrf.mxu0
    %v1054 = vadd.f32 0.0, %v1053
    %v1055 = vpop.f32.mrf.mxu0
    %v1056 = vpop.f32.mrf.mxu0
    %v1057 = vadd.f32 0.0, %v1056
    %v1058 = vpop.f32.mrf.mxu0
    %1059 = vmatprep.mubr.bf16.mxu0 0
    %1060 = vmatmul.mubr.bf16.gmra.mxu0 %v933
    %v1061 = vpop.f32.mrf.mxu0
    %v1062 = vadd.f32 0.0, %v1061
    %v1063 = vpop.f32.mrf.mxu0
    %v1064 = vpop.f32.mrf.mxu0
    %v1065 = vadd.f32 0.0, %v1064
    %v1066 = vpop.f32.mrf.mxu0
    %1067 = vmatprep.mubr.bf16.mxu0 0
    %1068 = vmatmul.mubr.bf16.gmra.mxu0 %v936
    %v1069 = vpop.f32.mrf.mxu0
    %v1070 = vadd.f32 0.0, %v1069
    %v1071 = vpop.f32.mrf.mxu0
    %v1072 = vpop.f32.mrf.mxu0
    %v1073 = vadd.f32 0.0, %v1072
    %v1074 = vpop.f32.mrf.mxu0
    %1075 = vmatprep.mubr.bf16.mxu0 0
    %1076 = vmatmul.mubr.bf16.gmra.mxu0 %v939
    %v1077 = vpop.f32.mrf.mxu0
    %v1078 = vadd.f32 0.0, %v1077
    %v1079 = vpop.f32.mrf.mxu0
    %v1080 = vpop.f32.mrf.mxu0
    %v1081 = vadd.f32 0.0, %v1080
    %v1082 = vpop.f32.mrf.mxu0
    %1083 = vmatprep.mubr.bf16.mxu0 0
    %1084 = vmatmul.mubr.bf16.gmra.mxu0 %v942
    %v1085 = vpop.f32.mrf.mxu0
    %v1086 = vadd.f32 0.0, %v1085
    %v1087 = vpop.f32.mrf.mxu0
    %v1088 = vpop.f32.mrf.mxu0
    %v1089 = vadd.f32 0.0, %v1088
    %v1090 = vpop.f32.mrf.mxu0
    %1091 = vmatprep.mubr.bf16.mxu0 0
    %1092 = vmatmul.mubr.bf16.gmra.mxu0 %v945
    %v1093 = vpop.f32.mrf.mxu0
    %v1094 = vadd.f32 0.0, %v1093
    %v1095 = vpop.f32.mrf.mxu0
    %v1096 = vpop.f32.mrf.mxu0
    %v1097 = vadd.f32 0.0, %v1096
    %v1098 = vpop.f32.mrf.mxu0
    %1099 = vmatprep.mubr.bf16.mxu0 0
    %1100 = vmatmul.mubr.bf16.gmra.mxu0 %v948
    %v1101 = vpop.f32.mrf.mxu0
    %v1102 = vadd.f32 0.0, %v1101
    %v1103 = vpop.f32.mrf.mxu0
    %v1104 = vpop.f32.mrf.mxu0
    %v1105 = vadd.f32 0.0, %v1104
    %v1106 = vpop.f32.mrf.mxu0
    %1107 = vmatprep.mubr.bf16.mxu0 0
    %1108 = vmatmul.mubr.bf16.gmra.mxu0 %v951
    %v1109 = vpop.f32.mrf.mxu0
    %v1110 = vadd.f32 0.0, %v1109
    %v1111 = vpop.f32.mrf.mxu0
    %v1112 = vpop.f32.mrf.mxu0
    %v1113 = vadd.f32 0.0, %v1112
    %v1114 = vpop.f32.mrf.mxu0
    %1115 = vmatprep.mubr.bf16.mxu0 0
    %1116 = vmatmul.mubr.bf16.gmra.mxu0 %v954
    %v1117 = vpop.f32.mrf.mxu0
    %v1118 = vadd.f32 0.0, %v1117
    %v1119 = vpop.f32.mrf.mxu0
    %v1120 = vpop.f32.mrf.mxu0
    %v1121 = vadd.f32 0.0, %v1120
    %v1122 = vpop.f32.mrf.mxu0
    %1123 = vmatprep.mubr.bf16.mxu0 0
    %1124 = vmatmul.mubr.bf16.gmra.mxu0 %v957
    %v1125 = vpop.f32.mrf.mxu0
    %v1126 = vadd.f32 0.0, %v1125
    %v1127 = vpop.f32.mrf.mxu0
    %v1128 = vpop.f32.mrf.mxu0
    %v1129 = vadd.f32 0.0, %v1128
    %v1130 = vpop.f32.mrf.mxu0
    %1131 = vmatprep.mubr.bf16.mxu0 0
    %1132 = vmatmul.mubr.bf16.gmra.mxu0 %v960
    %v1133 = vpop.f32.mrf.mxu0
    %v1134 = vadd.f32 0.0, %v1133
    %v1135 = vpop.f32.mrf.mxu0
    %v1136 = vpop.f32.mrf.mxu0
    %v1137 = vadd.f32 0.0, %v1136
    %v1138 = vpop.f32.mrf.mxu0
    %1139 = vmatprep.mubr.bf16.mxu0 0
    %1140 = vmatmul.mubr.bf16.gmra.mxu0 %v963
    %v1141 = vpop.f32.mrf.mxu0
    %v1142 = vadd.f32 0.0, %v1141
    %v1143 = vpop.f32.mrf.mxu0
    %v1144 = vpop.f32.mrf.mxu0
    %v1145 = vadd.f32 0.0, %v1144
    %v1146 = vpop.f32.mrf.mxu0
    %1147 = vmatprep.mubr.bf16.mxu0 0
    %1148 = vmatmul.mubr.bf16.gmra.mxu0 %v966
    %v1149 = vpop.f32.mrf.mxu0
    %v1150 = vadd.f32 0.0, %v1149
    %v1151 = vpop.f32.mrf.mxu0
    %v1152 = vpop.f32.mrf.mxu0
    %v1153 = vadd.f32 0.0, %v1152
    %v1154 = vpop.f32.mrf.mxu0
    %1155 = vmatprep.mubr.bf16.mxu0 0
    %1156 = vmatmul.mubr.bf16.gmra.mxu0 %v969
    %v1157 = vpop.f32.mrf.mxu0
    %v1158 = vadd.f32 0.0, %v1157
    %v1159 = vpop.f32.mrf.mxu0
    %v1160 = vpop.f32.mrf.mxu0
    %v1161 = vadd.f32 0.0, %v1160
    %v1162 = vpop.f32.mrf.mxu0
    %1163 = vmatprep.mubr.bf16.mxu0 0
    %1164 = vmatmul.mubr.bf16.gmra.mxu0 %v972
    %v1165 = vpop.f32.mrf.mxu0
    %v1166 = vadd.f32 0.0, %v1165
    %v1167 = vpop.f32.mrf.mxu0
    %v1168 = vpop.f32.mrf.mxu0
    %v1169 = vadd.f32 0.0, %v1168
    %v1170 = vpop.f32.mrf.mxu0
    %1171 = vmatprep.mubr.bf16.mxu0 0
    %1172 = vmatmul.mubr.bf16.gmra.mxu0 %v975
    %v1173 = vpop.f32.mrf.mxu0
    %v1174 = vadd.f32 0.0, %v1173
    %v1175 = vpop.f32.mrf.mxu0
    %v1176 = vpop.f32.mrf.mxu0
    %v1177 = vadd.f32 0.0, %v1176
    %v1178 = vpop.f32.mrf.mxu0
    %1179 = vmatprep.mubr.bf16.mxu0 0
    %1180 = vmatmul.mubr.bf16.gmra.mxu0 %v978
    %v1181 = vpop.f32.mrf.mxu0
    %v1182 = vadd.f32 0.0, %v1181
    %v1183 = vpop.f32.mrf.mxu0
    %v1184 = vpop.f32.mrf.mxu0
    %v1185 = vadd.f32 0.0, %v1184
    %v1186 = vpop.f32.mrf.mxu0
    %1187 = vmatprep.mubr.bf16.mxu0 0
    %1188 = vmatmul.mubr.bf16.gmra.mxu0 %v981
    %v1189 = vpop.f32.mrf.mxu0
    %v1190 = vadd.f32 0.0, %v1189
    %v1191 = vpop.f32.mrf.mxu0
    %v1192 = vpop.f32.mrf.mxu0
    %v1193 = vadd.f32 0.0, %v1192
    %v1194 = vpop.f32.mrf.mxu0
    %1195 = vmatprep.mubr.bf16.mxu0 0
    %1196 = vmatmul.mubr.bf16.gmra.mxu0 %v984
    %v1197 = vpop.f32.mrf.mxu0
    %v1198 = vadd.f32 0.0, %v1197
    %v1199 = vpop.f32.mrf.mxu0
    %v1200 = vpop.f32.mrf.mxu0
    %v1201 = vadd.f32 0.0, %v1200
    %v1202 = vpop.f32.mrf.mxu0
    %1203 = vmatprep.mubr.bf16.mxu0 0
    %1204 = vmatmul.mubr.bf16.gmra.mxu0 %v987
    %v1205 = vpop.f32.mrf.mxu0
    %v1206 = vadd.f32 0.0, %v1205
    %v1207 = vpop.f32.mrf.mxu0
    %v1208 = vpop.f32.mrf.mxu0
    %v1209 = vadd.f32 0.0, %v1208
    %v1210 = vpop.f32.mrf.mxu0
    %1211 = vmatprep.mubr.bf16.mxu0 0
    %1212 = vmatmul.mubr.bf16.gmra.mxu0 %v990
    %v1213 = vpop.f32.mrf.mxu0
    %v1214 = vadd.f32 0.0, %v1213
    %v1215 = vpop.f32.mrf.mxu0
    %v1216 = vpop.f32.mrf.mxu0
    %v1217 = vadd.f32 0.0, %v1216
    %v1218 = vpop.f32.mrf.mxu0
    %1219 = vdwg.mxu0
    %v1220 = vadd.f32 %v629, %v1030
    %v1221 = vadd.f32 %v632, %v1033
    %v1222 = vadd.f32 %v637, %v1038
    %v1223 = vadd.f32 %v640, %v1041
    %v1224 = vadd.f32 %v645, %v1046
    %v1225 = vadd.f32 %v648, %v1049
    %v1226 = vadd.f32 %v653, %v1054
    %v1227 = vadd.f32 %v656, %v1057
    %v1228 = vadd.f32 %v661, %v1062
    %v1229 = vadd.f32 %v664, %v1065
    %v1230 = vadd.f32 %v669, %v1070
    %v1231 = vadd.f32 %v672, %v1073
    %v1232 = vadd.f32 %v677, %v1078
    %v1233 = vadd.f32 %v680, %v1081
    %v1234 = vadd.f32 %v685, %v1086
    %v1235 = vadd.f32 %v688, %v1089
    %v1236 = vadd.f32 %v693, %v1094
    %v1237 = vadd.f32 %v696, %v1097
    %v1238 = vadd.f32 %v701, %v1102
    %v1239 = vadd.f32 %v704, %v1105
    %v1240 = vadd.f32 %v709, %v1110
    %v1241 = vadd.f32 %v712, %v1113
    %v1242 = vadd.f32 %v717, %v1118
    %v1243 = vadd.f32 %v720, %v1121
    %v1244 = vadd.f32 %v725, %v1126
    %v1245 = vadd.f32 %v728, %v1129
    %v1246 = vadd.f32 %v733, %v1134
    %v1247 = vadd.f32 %v736, %v1137
    %v1248 = vadd.f32 %v741, %v1142
    %v1249 = vadd.f32 %v744, %v1145
    %v1250 = vadd.f32 %v749, %v1150
    %v1251 = vadd.f32 %v752, %v1153
    %v1252 = vadd.f32 %v757, %v1158
    %v1253 = vadd.f32 %v760, %v1161
    %v1254 = vadd.f32 %v765, %v1166
    %v1255 = vadd.f32 %v768, %v1169
    %v1256 = vadd.f32 %v773, %v1174
    %v1257 = vadd.f32 %v776, %v1177
    %v1258 = vadd.f32 %v781, %v1182
    %v1259 = vadd.f32 %v784, %v1185
    %v1260 = vadd.f32 %v789, %v1190
    %v1261 = vadd.f32 %v792, %v1193
    %v1262 = vadd.f32 %v797, %v1198
    %v1263 = vadd.f32 %v800, %v1201
    %v1264 = vadd.f32 %v805, %v1206
    %v1265 = vadd.f32 %v808, %v1209
    %v1266 = vadd.f32 %v813, %v1214
    %v1267 = vadd.f32 %v816, %v1217
    %v1268 = vlaneseq
    %v1269 = vshrl.u32 %v1268, 7
    %v1270 = vadd.s32 %v1269, 8
    %v1271 = vadd.s32 %v1269, 16
    %vm1272 = vcmp.lt.s32.totalorder %v1269, 18
    %vm1273 = vcmp.lt.s32.totalorder %v1270, 18
    %vm1274 = vcmp.lt.s32.totalorder %v1271, 18
    %v1275 = vsel %vm1272, %v1220, -inf
    %v1276 = vsel %vm1273, %v1221, -inf
    %v1277 = vsel %vm1274, %v1222, -inf
    %v1278 = vsel %vm1272, %v1223, -inf
    %v1279 = vsel %vm1273, %v1224, -inf
    %v1280 = vsel %vm1274, %v1225, -inf
    %v1281 = vsel %vm1272, %v1226, -inf
    %v1282 = vsel %vm1273, %v1227, -inf
    %v1283 = vsel %vm1274, %v1228, -inf
    %v1284 = vsel %vm1272, %v1229, -inf
    %v1285 = vsel %vm1273, %v1230, -inf
    %v1286 = vsel %vm1274, %v1231, -inf
    %v1287 = vsel %vm1272, %v1232, -inf
    %v1288 = vsel %vm1273, %v1233, -inf
    %v1289 = vsel %vm1274, %v1234, -inf
    %v1290 = vsel %vm1272, %v1235, -inf
    %v1291 = vsel %vm1273, %v1236, -inf
    %v1292 = vsel %vm1274, %v1237, -inf
    %v1293 = vsel %vm1272, %v1238, -inf
    %v1294 = vsel %vm1273, %v1239, -inf
    %v1295 = vsel %vm1274, %v1240, -inf
    %v1296 = vsel %vm1272, %v1241, -inf
    %v1297 = vsel %vm1273, %v1242, -inf
    %v1298 = vsel %vm1274, %v1243, -inf
    %v1299 = vsel %vm1272, %v1244, -inf
    %v1300 = vsel %vm1273, %v1245, -inf
    %v1301 = vsel %vm1274, %v1246, -inf
    %v1302 = vsel %vm1272, %v1247, -inf
    %v1303 = vsel %vm1273, %v1248, -inf
    %v1304 = vsel %vm1274, %v1249, -inf
    %v1305 = vsel %vm1272, %v1250, -inf
    %v1306 = vsel %vm1273, %v1251, -inf
    %v1307 = vsel %vm1274, %v1252, -inf
    %v1308 = vsel %vm1272, %v1253, -inf
    %v1309 = vsel %vm1273, %v1254, -inf
    %v1310 = vsel %vm1274, %v1255, -inf
    %v1311 = vsel %vm1272, %v1256, -inf
    %v1312 = vsel %vm1273, %v1257, -inf
    %v1313 = vsel %vm1274, %v1258, -inf
    %v1314 = vsel %vm1272, %v1259, -inf
    %v1315 = vsel %vm1273, %v1260, -inf
    %v1316 = vsel %vm1274, %v1261, -inf
    %v1317 = vsel %vm1272, %v1262, -inf
    %v1318 = vsel %vm1273, %v1263, -inf
    %v1319 = vsel %vm1274, %v1264, -inf
    %v1320 = vsel %vm1272, %v1265, -inf
    %v1321 = vsel %vm1273, %v1266, -inf
    %v1322 = vsel %vm1274, %v1267, -inf
    %v1323 = vmax.f32 %v1275, %v1276
    %v1324 = vmax.f32 %v1323, %v1277
    %v1325 = vrot.slane %v1324, 4
    %v1326 = vmax.f32 %v1324, %v1325
    %v1327 = vrot.slane %v1326, 2
    %v1328 = vmax.f32 %v1326, %v1327
    %v1329 = vrot.slane %v1328, 1
    %v1330 = vmax.f32 %v1328, %v1329
    %v1331 = vmax.f32 %v1278, %v1279
    %v1332 = vmax.f32 %v1331, %v1280
    %v1333 = vrot.slane %v1332, 4
    %v1334 = vmax.f32 %v1332, %v1333
    %v1335 = vrot.slane %v1334, 2
    %v1336 = vmax.f32 %v1334, %v1335
    %v1337 = vrot.slane %v1336, 1
    %v1338 = vmax.f32 %v1336, %v1337
    %v1339 = vmax.f32 %v1281, %v1282
    %v1340 = vmax.f32 %v1339, %v1283
    %v1341 = vrot.slane %v1340, 4
    %v1342 = vmax.f32 %v1340, %v1341
    %v1343 = vrot.slane %v1342, 2
    %v1344 = vmax.f32 %v1342, %v1343
    %v1345 = vrot.slane %v1344, 1
    %v1346 = vmax.f32 %v1344, %v1345
    %v1347 = vmax.f32 %v1284, %v1285
    %v1348 = vmax.f32 %v1347, %v1286
    %v1349 = vrot.slane %v1348, 4
    %v1350 = vmax.f32 %v1348, %v1349
    %v1351 = vrot.slane %v1350, 2
    %v1352 = vmax.f32 %v1350, %v1351
    %v1353 = vrot.slane %v1352, 1
    %v1354 = vmax.f32 %v1352, %v1353
    %v1355 = vmax.f32 %v1287, %v1288
    %v1356 = vmax.f32 %v1355, %v1289
    %v1357 = vrot.slane %v1356, 4
    %v1358 = vmax.f32 %v1356, %v1357
    %v1359 = vrot.slane %v1358, 2
    %v1360 = vmax.f32 %v1358, %v1359
    %v1361 = vrot.slane %v1360, 1
    %v1362 = vmax.f32 %v1360, %v1361
    %v1363 = vmax.f32 %v1290, %v1291
    %v1364 = vmax.f32 %v1363, %v1292
    %v1365 = vrot.slane %v1364, 4
    %v1366 = vmax.f32 %v1364, %v1365
    %v1367 = vrot.slane %v1366, 2
    %v1368 = vmax.f32 %v1366, %v1367
    %v1369 = vrot.slane %v1368, 1
    %v1370 = vmax.f32 %v1368, %v1369
    %v1371 = vmax.f32 %v1293, %v1294
    %v1372 = vmax.f32 %v1371, %v1295
    %v1373 = vrot.slane %v1372, 4
    %v1374 = vmax.f32 %v1372, %v1373
    %v1375 = vrot.slane %v1374, 2
    %v1376 = vmax.f32 %v1374, %v1375
    %v1377 = vrot.slane %v1376, 1
    %v1378 = vmax.f32 %v1376, %v1377
    %v1379 = vmax.f32 %v1296, %v1297
    %v1380 = vmax.f32 %v1379, %v1298
    %v1381 = vrot.slane %v1380, 4
    %v1382 = vmax.f32 %v1380, %v1381
    %v1383 = vrot.slane %v1382, 2
    %v1384 = vmax.f32 %v1382, %v1383
    %v1385 = vrot.slane %v1384, 1
    %v1386 = vmax.f32 %v1384, %v1385
    %v1387 = vmax.f32 %v1299, %v1300
    %v1388 = vmax.f32 %v1387, %v1301
    %v1389 = vrot.slane %v1388, 4
    %v1390 = vmax.f32 %v1388, %v1389
    %v1391 = vrot.slane %v1390, 2
    %v1392 = vmax.f32 %v1390, %v1391
    %v1393 = vrot.slane %v1392, 1
    %v1394 = vmax.f32 %v1392, %v1393
    %v1395 = vmax.f32 %v1302, %v1303
    %v1396 = vmax.f32 %v1395, %v1304
    %v1397 = vrot.slane %v1396, 4
    %v1398 = vmax.f32 %v1396, %v1397
    %v1399 = vrot.slane %v1398, 2
    %v1400 = vmax.f32 %v1398, %v1399
    %v1401 = vrot.slane %v1400, 1
    %v1402 = vmax.f32 %v1400, %v1401
    %v1403 = vmax.f32 %v1305, %v1306
    %v1404 = vmax.f32 %v1403, %v1307
    %v1405 = vrot.slane %v1404, 4
    %v1406 = vmax.f32 %v1404, %v1405
    %v1407 = vrot.slane %v1406, 2
    %v1408 = vmax.f32 %v1406, %v1407
    %v1409 = vrot.slane %v1408, 1
    %v1410 = vmax.f32 %v1408, %v1409
    %v1411 = vmax.f32 %v1308, %v1309
    %v1412 = vmax.f32 %v1411, %v1310
    %v1413 = vrot.slane %v1412, 4
    %v1414 = vmax.f32 %v1412, %v1413
    %v1415 = vrot.slane %v1414, 2
    %v1416 = vmax.f32 %v1414, %v1415
    %v1417 = vrot.slane %v1416, 1
    %v1418 = vmax.f32 %v1416, %v1417
    %v1419 = vmax.f32 %v1311, %v1312
    %v1420 = vmax.f32 %v1419, %v1313
    %v1421 = vrot.slane %v1420, 4
    %v1422 = vmax.f32 %v1420, %v1421
    %v1423 = vrot.slane %v1422, 2
    %v1424 = vmax.f32 %v1422, %v1423
    %v1425 = vrot.slane %v1424, 1
    %v1426 = vmax.f32 %v1424, %v1425
    %v1427 = vmax.f32 %v1314, %v1315
    %v1428 = vmax.f32 %v1427, %v1316
    %v1429 = vrot.slane %v1428, 4
    %v1430 = vmax.f32 %v1428, %v1429
    %v1431 = vrot.slane %v1430, 2
    %v1432 = vmax.f32 %v1430, %v1431
    %v1433 = vrot.slane %v1432, 1
    %v1434 = vmax.f32 %v1432, %v1433
    %v1435 = vmax.f32 %v1317, %v1318
    %v1436 = vmax.f32 %v1435, %v1319
    %v1437 = vrot.slane %v1436, 4
    %v1438 = vmax.f32 %v1436, %v1437
    %v1439 = vrot.slane %v1438, 2
    %v1440 = vmax.f32 %v1438, %v1439
    %v1441 = vrot.slane %v1440, 1
    %v1442 = vmax.f32 %v1440, %v1441
    %v1443 = vmax.f32 %v1320, %v1321
    %v1444 = vmax.f32 %v1443, %v1322
    %v1445 = vrot.slane %v1444, 4
    %v1446 = vmax.f32 %v1444, %v1445
    %v1447 = vrot.slane %v1446, 2
    %v1448 = vmax.f32 %v1446, %v1447
    %v1449 = vrot.slane %v1448, 1
    %v1450 = vmax.f32 %v1448, %v1449
    %v1451 = vld [vmem:[%s2] sm:$0x1]
    %v1453 = vlaneseq
    %v1454 = vshrl.u32 %v1453, 7
    %v1455 = vsub.s32 0, %v1454
    %v1456 = vrot.slane %v1451, %v1455
    %v1458 = vadd.f32 %v1330, %v1456
    %v1459 = vadd.f32 %v1338, %v1456
    %v1460 = vadd.f32 %v1346, %v1456
    %v1461 = vadd.f32 %v1354, %v1456
    %v1462 = vadd.f32 %v1362, %v1456
    %v1463 = vadd.f32 %v1370, %v1456
    %v1464 = vadd.f32 %v1378, %v1456
    %v1465 = vadd.f32 %v1386, %v1456
    %v1466 = vadd.f32 %v1394, %v1456
    %v1467 = vadd.f32 %v1402, %v1456
    %v1468 = vadd.f32 %v1410, %v1456
    %v1469 = vadd.f32 %v1418, %v1456
    %v1470 = vadd.f32 %v1426, %v1456
    %v1471 = vadd.f32 %v1434, %v1456
    %v1472 = vadd.f32 %v1442, %v1456
    %v1473 = vadd.f32 %v1450, %v1456
    %v1490 = vrot.slane %v1459, 7
    %vm1491 = vcmask 1041409
    %v1492 = vsel %vm1491, %v1490, %v1458
    %v1493 = vrot.slane %v1460, 6
    %vm1494 = vcmask 1042434
    %v1495 = vsel %vm1494, %v1493, %v1492
    %v1496 = vrot.slane %v1461, 5
    %vm1497 = vcmask 1043459
    %v1498 = vsel %vm1497, %v1496, %v1495
    %v1499 = vrot.slane %v1462, 4
    %vm1500 = vcmask 1044484
    %v1501 = vsel %vm1500, %v1499, %v1498
    %v1502 = vrot.slane %v1463, 3
    %vm1503 = vcmask 1045509
    %v1504 = vsel %vm1503, %v1502, %v1501
    %v1505 = vrot.slane %v1464, 2
    %vm1506 = vcmask 1046534
    %v1507 = vsel %vm1506, %v1505, %v1504
    %v1508 = vrot.slane %v1465, 1
    %vm1509 = vcmask 1047559
    %v1510 = vsel %vm1509, %v1508, %v1507
    %v1511 = vrot.slane %v1467, 7
    %v1512 = vsel %vm1491, %v1511, %v1466
    %v1513 = vrot.slane %v1468, 6
    %v1514 = vsel %vm1494, %v1513, %v1512
    %v1515 = vrot.slane %v1469, 5
    %v1516 = vsel %vm1497, %v1515, %v1514
    %v1517 = vrot.slane %v1470, 4
    %v1518 = vsel %vm1500, %v1517, %v1516
    %v1519 = vrot.slane %v1471, 3
    %v1520 = vsel %vm1503, %v1519, %v1518
    %v1521 = vrot.slane %v1472, 2
    %v1522 = vsel %vm1506, %v1521, %v1520
    %v1523 = vrot.slane %v1473, 1
    %v1524 = vsel %vm1509, %v1523, %v1522
    %1527 = vst [vmem:[#allocation2] sm:$0xff] %v1510
    %1528 = vst [vmem:[#allocation2 + $0x8] sm:$0xff] %v1524
    // Predicated region
    $region14: #{cnn_maxpool.1} parent=1 // pred_check
      _
    $region15: #{cnn_maxpool.1} parent=1 // pred_check_branch
      %1530 = sbr.rel (0) target = $region17
    $region16: #{cnn_maxpool.1} parent=1 // pred_region
      %s1532 = ssub.s32 256, 256
      %1533 = vsyncadd [#allocation3], %s1532
      %s1534 = sshll.u32 [#allocation2], 4
      %s1535 = int_to_ptr.vmem [resolvable:$true] %s1534
      %1540 = dma.vmem_to_hbm [thread:$0]  %s1535, 256, %s3, [#allocation3], 128, 128, 8
    $region17: #{cnn_maxpool.1} parent=1 // pred_fallthru
      _
    // Predicated region
    $region18: #{cnn_maxpool.1} parent=1 // pred_check
      _
    $region19: #{cnn_maxpool.1} parent=1 // pred_check_branch
      %1542 = sbr.rel (0) target = $region21
    $region20: #{cnn_maxpool.1} parent=1 // pred_region
      %1543 = dma.done [#allocation3], 256
    $region21: #{cnn_maxpool.1} parent=1 // pred_fallthru
      _
    %1544 = vsyncpa [#allocation3], 1

</llo_original>
